<compile_context>
chip_gen: v6e
topology: v6e:2x2x1
jax: 0.10.0
libtpu: 0.0.40
codegen_flags: <defaults>
</compile_context>

<pallas_src>
import math
from functools import partial

import jax
import jax.numpy as jnp
from jax.experimental import pallas as pl
from jax.experimental.pallas import tpu as pltpu


def _round_up(v, m):
    return ((v + m - 1) // m) * m


def _hybrid_ldl_block_kernel(x_ref, y_ref, out_ref, *,
                             lambda_1, lambda_2, lambda_3, sigma,
                             batch, total_k, tile_b, needs_mask):
    i = pl.program_id(0)

    # Cast at load, compute in f32 (v5e VPU/EUP have no bf16 math).
    x = x_ref[...].astype(jnp.float32)            # (TB, K) logits
    y = y_ref[...].astype(jnp.float32)            # (TB, 1) labels
    TB, K = x.shape
    f32 = jnp.float32

    # Bin values Ks = [1..K] along the lane axis, plus constant (K, 1) reduction
    # columns so all row (axis=1) sums run on the otherwise-idle MXU instead of the XLU.
    ks = (jax.lax.broadcasted_iota(jnp.int32, (TB, K), 1) + 1).astype(f32)
    ones_col = jnp.ones((K, 1), f32)
    ks_col = (jax.lax.broadcasted_iota(jnp.int32, (K, 1), 0) + 1).astype(f32)

    # Numerically-stable softmax numerator; denominator factored out (one reciprocal
    # per row) instead of materializing p = e / denom over the whole (TB, K) block.
    m = jnp.max(x, axis=1, keepdims=True)
    e = jnp.exp(x - m)                                                   # (TB, K)
    denom = jnp.dot(e, ones_col, preferred_element_type=f32)             # (TB, 1)
    inv_denom = 1.0 / denom

    row_loss = jnp.zeros((TB, 1), f32)

    ev = None
    if abs(lambda_2) > 0.0 or abs(lambda_3) > 0.0:
        # Expected bin value E[b] = sum_k p*ks = (e @ ks) / denom.
        ev = jnp.dot(e, ks_col, preferred_element_type=f32) * inv_denom  # (TB, 1)

    if abs(lambda_1) > 0.0:
        inv_two_sigma2 = 1.0 / (2.0 * sigma * sigma)
        log_norm = -math.log(math.sqrt(2.0 * math.pi) * sigma)
        d = y - ks
        log_t = log_norm - d * d * inv_two_sigma2      # analytic log pdf: finite even if t underflows
        t = jnp.exp(log_t)
        # torch kl_div(input=p, target=t, reduction='mean') over all B*K elements:
        #   sum_k t*(log t - p) = sum_k t*log t  -  (sum_k t*e) / denom
        sum_tlogt = jnp.dot(t * log_t, ones_col, preferred_element_type=f32)
        sum_te = jnp.dot(t * e, ones_col, preferred_element_type=f32)
        kl_row = sum_tlogt - sum_te * inv_denom
        row_loss = row_loss + (lambda_1 / (batch * total_k)) * kl_row

    if abs(lambda_2) > 0.0:
        row_loss = row_loss + (lambda_2 / batch) * jnp.abs(ev - y)

    if abs(lambda_3) > 0.0:
        dv = ev - ks                                                     # (TB, K)
        var_row = jnp.dot(e * dv * dv, ones_col, preferred_element_type=f32) * inv_denom
        row_loss = row_loss + (lambda_3 / batch) * var_row

    if needs_mask:
        row_idx = jax.lax.broadcasted_iota(jnp.int32, (TB, 1), 0) + i * tile_b
        row_loss = jnp.where(row_idx < batch, row_loss, 0.0)

    block_sum = jnp.sum(row_loss)
    # Lane-dense (1, 8, 128) output tile per grid step; wrapper reads [:, 0, 0] and sums.
    out_ref[...] = jnp.broadcast_to(block_sum, out_ref.shape)


def make_hybrid_ldl_loss(parameters, tile_b=None):
    """Returns a jitted callable (x, y) -> scalar loss, mirroring HybridLDLLoss."""
    lambda_1 = float(parameters["lambda_1"])
    lambda_2 = float(parameters["lambda_2"])
    lambda_3 = float(parameters["lambda_3"])
    sigma = float(parameters["sigma"])
    num_k = int(parameters["max_k"]) - int(parameters["min_k"])

    if not (abs(lambda_1) > 0.0 or abs(lambda_2) > 0.0 or abs(lambda_3) > 0.0):
        return jax.jit(lambda x, y: jnp.float32(0.0))

    @jax.jit
    def loss_fn(x, y):
        B, K = x.shape
        assert K == num_k, (x.shape, num_k)
        y2 = jnp.reshape(y, (-1, 1))       # (B, 1); keep native dtype — kernel casts to f32

        # Batch tile: big blocks (per-grid-step overhead ~0.35 us), multiple of 8 sublanes.
        if tile_b is None:
            tb = min(1024, _round_up(B, 8))
        else:
            tb = max(8, _round_up(int(tile_b), 8))
            tb = min(tb, _round_up(B, 8))
        b_pad = _round_up(B, tb)
        nb = b_pad // tb
        needs_mask = b_pad != B

        if needs_mask:
            x_in = jnp.pad(x, ((0, b_pad - B), (0, 0)))
            y_in = jnp.pad(y2, ((0, b_pad - B), (0, 0)))
        else:
            x_in, y_in = x, y2

        kernel = partial(
            _hybrid_ldl_block_kernel,
            lambda_1=lambda_1, lambda_2=lambda_2, lambda_3=lambda_3, sigma=sigma,
            batch=B, total_k=K, tile_b=tb, needs_mask=needs_mask)

        # VMEM budget: 2x double-buffered input tiles + tiny output; stays well under
        # v7x's 32 MiB scoped / 64 MiB physical VMEM (and trivially under v5e/v6e's 128 MiB).
        x_bytes = tb * K * x_in.dtype.itemsize
        y_bytes = tb * y_in.dtype.itemsize
        vmem_limit = int(min(32 * 1024 * 1024,
                             max(2 * 1024 * 1024, 4 * (x_bytes + y_bytes) + (1 << 20))))

        cost = pl.CostEstimate(
            flops=int(40 * b_pad * K),
            transcendentals=int(2 * b_pad * K),
            bytes_accessed=int(x_in.size * x_in.dtype.itemsize
                               + y_in.size * y_in.dtype.itemsize
                               + nb * 8 * 128 * 4))

        partials = pl.pallas_call(
            kernel,
            out_shape=jax.ShapeDtypeStruct((nb, 8, 128), jnp.float32),
            grid=(nb,),
            in_specs=[
                pl.BlockSpec((tb, K), lambda i: (i, 0)),   # logits tile
                pl.BlockSpec((tb, 1), lambda i: (i, 0)),   # labels tile
            ],
            out_specs=pl.BlockSpec((1, 8, 128), lambda i: (i, 0, 0)),
            compiler_params=pltpu.CompilerParams(
                dimension_semantics=("parallel",),          # independent batch blocks (2 TCs on v7x)
                vmem_limit_bytes=vmem_limit),
            cost_estimate=cost,
        )(x_in, y_in)

        return jnp.sum(partials[:, 0, 0])

    return loss_fn


def _reference(x, y, parameters):
    """Pure-JAX reference implementing the same (intended) math."""
    lambda_1 = parameters["lambda_1"]
    lambda_2 = parameters["lambda_2"]
    lambda_3 = parameters["lambda_3"]
    sigma = parameters["sigma"]
    K = parameters["max_k"] - parameters["min_k"]

    p = jax.nn.softmax(x.astype(jnp.float32), axis=1)
    ks = jnp.arange(1, K + 1, dtype=jnp.float32)[None, :]
    yb = jnp.reshape(y, (-1, 1)).astype(jnp.float32)

    # log pdf computed analytically (torch kl_div's xlogy gives 0 where t underflows to 0).
    log_t = -(yb - ks) ** 2 / (2.0 * sigma ** 2) - math.log(math.sqrt(2.0 * math.pi) * sigma)
    t = jnp.exp(log_t)
    kl = jnp.mean(t * (log_t - p))
    ev = p @ ks.T
    l1 = jnp.mean(jnp.abs(ev - yb))
    var = jnp.mean(jnp.sum(p * (ev - ks) ** 2, axis=1))
    return lambda_1 * kl + lambda_2 * l1 + lambda_3 * var


if __name__ == "__main__":
    params = dict(min_k=0, max_k=32,
                  lambda_1=1.0, lambda_2=0.5, lambda_3=0.1,
                  sigma=2.0)
    K = params["max_k"] - params["min_k"]

    key = jax.random.PRNGKey(0)
    kx, ky = jax.random.split(key)

    # Small-but-gridded case: B=40 logits, tile_b=16 -> 3 grid steps, 8 padded rows masked.
    B = 40
    x = jax.random.normal(kx, (B, K), dtype=jnp.float32)                 # logits
    y = jax.random.uniform(ky, (B,), minval=1.0, maxval=float(K),
                           dtype=jnp.float32)                            # continuous labels

    loss_fn = make_hybrid_ldl_loss(params, tile_b=16)
    out = jax.block_until_ready(loss_fn(x, y))
    ref = jax.block_until_ready(_reference(x, y, params))
    assert out.shape == (), f"expected scalar, got {out.shape}"
    assert bool(jnp.isfinite(out)), float(out)
    assert jnp.allclose(out, ref, rtol=1e-5, atol=1e-5), (float(out), float(ref))

    # Default (single-block) path with native bf16 logits fed straight to the kernel.
    loss_fn2 = make_hybrid_ldl_loss(params)
    x16 = x.astype(jnp.bfloat16)
    out2 = jax.block_until_ready(loss_fn2(x16, y))
    ref2 = jax.block_until_ready(_reference(x16, y, params))
    assert bool(jnp.isfinite(out2)), float(out2)
    assert jnp.allclose(out2, ref2, rtol=1e-4, atol=1e-4), (float(out2), float(ref2))

    print("KERNEL_OK")
</pallas_src>

<mosaic_0001>
module attributes {stable_mosaic.version = 11 : i64} {
  func.func @_hybrid_ldl_block_kernel(%arg0: i32, %arg1: memref<16x32xf32, #tpu.memory_space<vmem>>, %arg2: memref<16x1xf32, #tpu.memory_space<vmem>>, %arg3: memref<1x8x128xf32, #tpu.memory_space<vmem>>) attributes {dimension_semantics = [#tpu.dimension_semantics<parallel>], iteration_bounds = array<i64: 3>, scalar_prefetch = 0 : i64, scratch_operands = 0 : i64, tpu.core_type = #tpu.core_type<tc>, window_params = [{transform_indices = @transform_0, window_bounds = array<i64: 16, 32>}, {transform_indices = @transform_1, window_bounds = array<i64: 16, 1>}, {transform_indices = @transform_2, window_bounds = array<i64: 1, 8, 128>}]} {
    %c0 = arith.constant 0 : index
    %c0_0 = arith.constant 0 : index
    %0 = vector.load %arg1[%c0, %c0_0] : memref<16x32xf32, #tpu.memory_space<vmem>>, vector<16x32xf32>
    %c0_1 = arith.constant 0 : index
    %c0_2 = arith.constant 0 : index
    %1 = vector.load %arg2[%c0_1, %c0_2] : memref<16x1xf32, #tpu.memory_space<vmem>>, vector<16x1xf32>
    %2 = tpu.iota {dimensions = array<i32: 1>} : vector<16x32xi32>
    %c1_i32 = arith.constant 1 : i32
    %3 = vector.broadcast %c1_i32 : i32 to vector<16x32xi32>
    %4 = arith.addi %2, %3 : vector<16x32xi32>
    %5 = arith.sitofp %4 : vector<16x32xi32> to vector<16x32xf32>
    %cst = arith.constant 1.000000e+00 : f32
    %6 = vector.broadcast %cst : f32 to vector<32x1xf32>
    %7 = tpu.iota {dimensions = array<i32: 0>} : vector<32x1xi32>
    %c1_i32_3 = arith.constant 1 : i32
    %8 = vector.broadcast %c1_i32_3 : i32 to vector<32x1xi32>
    %9 = arith.addi %7, %8 : vector<32x1xi32>
    %10 = arith.sitofp %9 : vector<32x1xi32> to vector<32x1xf32>
    %cst_4 = arith.constant dense<0xFF800000> : vector<16xf32>
    %11 = vector.multi_reduction <maximumf>, %0, %cst_4 [1] : vector<16x32xf32> to vector<16xf32>
    %12 = vector.shape_cast %11 : vector<16xf32> to vector<16x1xf32>
    %13 = vector.broadcast %12 : vector<16x1xf32> to vector<16x32xf32>
    %14 = arith.subf %0, %13 : vector<16x32xf32>
    %15 = math.exp %14 : vector<16x32xf32>
    %cst_5 = arith.constant dense<0.000000e+00> : vector<16x1xf32>
    %16 = tpu.matmul %15, %6, %cst_5 {dimension_numbers = #tpu.dot_dimension_numbers<[1], [0], [0], [1], [0, 0, 1, 1], [], []>} : vector<16x32xf32>, vector<32x1xf32>, vector<16x1xf32> -> vector<16x1xf32>
    %cst_6 = arith.constant 1.000000e+00 : f32
    %17 = vector.broadcast %cst_6 : f32 to vector<16x1xf32>
    %18 = arith.divf %17, %16 : vector<16x1xf32>
    %cst_7 = arith.constant 0.000000e+00 : f32
    %19 = vector.broadcast %cst_7 : f32 to vector<16x1xf32>
    %cst_8 = arith.constant dense<0.000000e+00> : vector<16x1xf32>
    %20 = tpu.matmul %15, %10, %cst_8 {dimension_numbers = #tpu.dot_dimension_numbers<[1], [0], [0], [1], [0, 0, 1, 1], [], []>} : vector<16x32xf32>, vector<32x1xf32>, vector<16x1xf32> -> vector<16x1xf32>
    %21 = arith.mulf %20, %18 : vector<16x1xf32>
    %22 = vector.broadcast %1 : vector<16x1xf32> to vector<16x32xf32>
    %23 = arith.subf %22, %5 : vector<16x32xf32>
    %24 = arith.mulf %23, %23 : vector<16x32xf32>
    %cst_9 = arith.constant 1.250000e-01 : f32
    %25 = vector.broadcast %cst_9 : f32 to vector<16x32xf32>
    %26 = arith.mulf %24, %25 : vector<16x32xf32>
    %cst_10 = arith.constant -1.6120857 : f32
    %27 = vector.broadcast %cst_10 : f32 to vector<16x32xf32>
    %28 = arith.subf %27, %26 : vector<16x32xf32>
    %29 = math.exp %28 : vector<16x32xf32>
    %30 = arith.mulf %29, %28 : vector<16x32xf32>
    %cst_11 = arith.constant dense<0.000000e+00> : vector<16x1xf32>
    %31 = tpu.matmul %30, %6, %cst_11 {dimension_numbers = #tpu.dot_dimension_numbers<[1], [0], [0], [1], [0, 0, 1, 1], [], []>} : vector<16x32xf32>, vector<32x1xf32>, vector<16x1xf32> -> vector<16x1xf32>
    %32 = arith.mulf %29, %15 : vector<16x32xf32>
    %cst_12 = arith.constant dense<0.000000e+00> : vector<16x1xf32>
    %33 = tpu.matmul %32, %6, %cst_12 {dimension_numbers = #tpu.dot_dimension_numbers<[1], [0], [0], [1], [0, 0, 1, 1], [], []>} : vector<16x32xf32>, vector<32x1xf32>, vector<16x1xf32> -> vector<16x1xf32>
    %34 = arith.mulf %33, %18 : vector<16x1xf32>
    %35 = arith.subf %31, %34 : vector<16x1xf32>
    %cst_13 = arith.constant 7.812500e-04 : f32
    %36 = vector.broadcast %cst_13 : f32 to vector<16x1xf32>
    %37 = arith.mulf %36, %35 : vector<16x1xf32>
    %38 = arith.addf %19, %37 : vector<16x1xf32>
    %39 = arith.subf %21, %1 : vector<16x1xf32>
    %40 = math.absf %39 : vector<16x1xf32>
    %cst_14 = arith.constant 1.250000e-02 : f32
    %41 = vector.broadcast %cst_14 : f32 to vector<16x1xf32>
    %42 = arith.mulf %41, %40 : vector<16x1xf32>
    %43 = arith.addf %38, %42 : vector<16x1xf32>
    %44 = vector.broadcast %21 : vector<16x1xf32> to vector<16x32xf32>
    %45 = arith.subf %44, %5 : vector<16x32xf32>
    %46 = arith.mulf %15, %45 : vector<16x32xf32>
    %47 = arith.mulf %46, %45 : vector<16x32xf32>
    %cst_15 = arith.constant dense<0.000000e+00> : vector<16x1xf32>
    %48 = tpu.matmul %47, %6, %cst_15 {dimension_numbers = #tpu.dot_dimension_numbers<[1], [0], [0], [1], [0, 0, 1, 1], [], []>} : vector<16x32xf32>, vector<32x1xf32>, vector<16x1xf32> -> vector<16x1xf32>
    %49 = arith.mulf %48, %18 : vector<16x1xf32>
    %cst_16 = arith.constant 2.500000e-03 : f32
    %50 = vector.broadcast %cst_16 : f32 to vector<16x1xf32>
    %51 = arith.mulf %50, %49 : vector<16x1xf32>
    %52 = arith.addf %43, %51 : vector<16x1xf32>
    %53 = tpu.iota {dimensions = array<i32: 0>} : vector<16x1xi32>
    %c16_i32 = arith.constant 16 : i32
    %54 = arith.muli %arg0, %c16_i32 : i32
    %55 = vector.broadcast %54 : i32 to vector<16x1xi32>
    %56 = arith.addi %53, %55 : vector<16x1xi32>
    %c40_i32 = arith.constant 40 : i32
    %57 = vector.broadcast %c40_i32 : i32 to vector<16x1xi32>
    %58 = arith.cmpi slt, %56, %57 : vector<16x1xi32>
    %cst_17 = arith.constant 0.000000e+00 : f32
    %59 = vector.broadcast %cst_17 : f32 to vector<16x1xf32>
    %60 = arith.select %58, %52, %59 : vector<16x1xi1>, vector<16x1xf32>
    %61 = vector.shape_cast %60 : vector<16x1xf32> to vector<1x16x1xf32>
    %cst_18 = arith.constant dense<0.000000e+00> : vector<1xf32>
    %62 = vector.multi_reduction <add>, %61, %cst_18 [1, 2] : vector<1x16x1xf32> to vector<1xf32>
    %63 = vector.shape_cast %62 : vector<1xf32> to vector<1x1x1xf32>
    %64 = vector.extract %63[0, 0, 0] : f32 from vector<1x1x1xf32>
    %65 = vector.broadcast %64 : f32 to vector<1x8x128xf32>
    %c0_19 = arith.constant 0 : index
    %c0_20 = arith.constant 0 : index
    %c0_21 = arith.constant 0 : index
    %66 = vector.load %arg3[%c0_19, %c0_20, %c0_21] : memref<1x8x128xf32, #tpu.memory_space<vmem>>, vector<1x8x128xf32>
    tpu.vector_store %arg3[%c0_19, %c0_20, %c0_21], %65 {strides = array<i32>} : memref<1x8x128xf32, #tpu.memory_space<vmem>>, vector<1x8x128xf32>,
    return
  }
  func.func @transform_0(%arg0: i32) -> (i32, i32) {
    %c0_i32 = arith.constant 0 : i32
    %c0_i32_0 = arith.constant 0 : i32
    return %arg0, %c0_i32 : i32, i32
  }
  func.func @transform_1(%arg0: i32) -> (i32, i32) {
    %c0_i32 = arith.constant 0 : i32
    %c0_i32_0 = arith.constant 0 : i32
    return %arg0, %c0_i32 : i32, i32
  }
  func.func @transform_2(%arg0: i32) -> (i32, i32, i32) {
    %c0_i32 = arith.constant 0 : i32
    %c0_i32_0 = arith.constant 0 : i32
    %c0_i32_1 = arith.constant 0 : i32
    return %arg0, %c0_i32, %c0_i32_0 : i32, i32, i32
  }
}

</mosaic_0001>

<llo_original>
// kernel: loss_fn.1
$region0: #{loss_fn.1}
  #allocation0 [shape = 'u32[]', space=smem, size = 0x4, offset = 0x4, fixed_abs, tag = 'smem constant byte address 0x4 - core index']
  #allocation1 [shape = 'u32[144,128]{1,0:T(1,128)}', space=vmem, size = 0x12000, scoped, tag = 'internal scratch']
  %s0 = inlined_call_operand.vmem [shape: f32[48,32], index: 0, kind: input, shape index: {}]
  %s1 = inlined_call_operand.vmem [shape: f32[48,1], index: 1, kind: input, shape index: {}]
  %s2 = inlined_call_operand.vmem [shape: f32[3,8,128], index: 2, kind: output, shape index: {}]
  %s3 = sld [smem:[#allocation0]]
  $region41: #{loss_fn.1} parent=0
    _
  %s5 = ssub.s32 1, %s3
  %s6 = scalar_select 0, %s5, %s3
  loop: start=0, step=1, limit=5
  $region2: #{loss_fn.1} parent=0 // loop_pre_header
    _
  $region3: #{loss_fn.1} parent=0 // loop_header
    %s8 = sphi 0, %s12
    %p9 = scmp.ge.s32.totalorder %s8, 5
    %s18 = sphi 0, %s20
    %s21 = sphi 0, %s18
    %s22 = sphi 0, %s21
    %s38 = sphi 0, %s22
    %s44 = sphi 0, %s46
    %s47 = sphi 0, %s44
    %s48 = sphi 0, %s47
    %s64 = sphi 0, %s48
    %s70 = sphi 0, %s72
    %s73 = sphi 0, %s70
    %s74 = sphi 0, %s73
    %s90 = sphi 0, %s74
  $region4: #{loss_fn.1} parent=0 // loop_header_branch
    %11 = sbr.rel (%p9) target = $region8
  $region5: #{loss_fn.1} parent=0 // loop_body
    %s13 = ssub.s32 %s8, 1
    %s14 = ssub.s32 %s8, 2
    %s15 = sadd.s32 %s8, 1
    %s16 = ssub.s32 %s8, %s15
    %p17 = scmp.eq.s32.totalorder %s16, 0
    %s19 = sadd.s32 %s18, 1
    %s20 = scalar_select %p17, %s18, %s19
    %p23 = pneg %p17
    %p24 = scmp.eq.s32.totalorder %s8, 2
    %p25 = por %p23, %p24
    %p26 = scmp.ne.s32.totalorder %s18, %s21
    %p27 = scmp.eq.s32.totalorder %s8, 0
    %p28 = por %p26, %p27
    %p29 = scmp.ne.s32.totalorder %s18, %s21
    %p30 = scmp.eq.s32.totalorder %s13, 2
    %p31 = por %p29, %p30
    %p32 = scmp.ne.s32.totalorder %s21, %s22
    %p33 = scmp.eq.s32.totalorder %s13, 0
    %p34 = por %p32, %p33
    %p35 = scmp.ne.s32.totalorder %s21, %s22
    %p36 = scmp.eq.s32.totalorder %s14, 2
    %p37 = por %p35, %p36
    %p39 = scmp.ne.s32.totalorder %s22, %s38
    %p40 = scmp.eq.s32.totalorder %s14, 0
    %p41 = por %p39, %p40
    %s42 = ssub.s32 %s8, %s15
    %p43 = scmp.eq.s32.totalorder %s42, 0
    %s45 = sadd.s32 %s44, 1
    %s46 = scalar_select %p43, %s44, %s45
    %p49 = pneg %p43
    %p50 = scmp.eq.s32.totalorder %s8, 2
    %p51 = por %p49, %p50
    %p52 = scmp.ne.s32.totalorder %s44, %s47
    %p53 = scmp.eq.s32.totalorder %s8, 0
    %p54 = por %p52, %p53
    %p55 = scmp.ne.s32.totalorder %s44, %s47
    %p56 = scmp.eq.s32.totalorder %s13, 2
    %p57 = por %p55, %p56
    %p58 = scmp.ne.s32.totalorder %s47, %s48
    %p59 = scmp.eq.s32.totalorder %s13, 0
    %p60 = por %p58, %p59
    %p61 = scmp.ne.s32.totalorder %s47, %s48
    %p62 = scmp.eq.s32.totalorder %s14, 2
    %p63 = por %p61, %p62
    %p65 = scmp.ne.s32.totalorder %s48, %s64
    %p66 = scmp.eq.s32.totalorder %s14, 0
    %p67 = por %p65, %p66
    %s68 = ssub.s32 %s8, %s15
    %p69 = scmp.eq.s32.totalorder %s68, 0
    %s71 = sadd.s32 %s70, 1
    %s72 = scalar_select %p69, %s70, %s71
    %p75 = pneg %p69
    %p76 = scmp.eq.s32.totalorder %s8, 2
    %p77 = por %p75, %p76
    %p78 = scmp.ne.s32.totalorder %s70, %s73
    %p79 = scmp.eq.s32.totalorder %s8, 0
    %p80 = por %p78, %p79
    %p81 = scmp.ne.s32.totalorder %s70, %s73
    %p82 = scmp.eq.s32.totalorder %s13, 2
    %p83 = por %p81, %p82
    %p84 = scmp.ne.s32.totalorder %s73, %s74
    %p85 = scmp.eq.s32.totalorder %s13, 0
    %p86 = por %p84, %p85
    %p87 = scmp.ne.s32.totalorder %s73, %s74
    %p88 = scmp.eq.s32.totalorder %s14, 2
    %p89 = por %p87, %p88
    %p91 = scmp.ne.s32.totalorder %s74, %s90
    %p92 = scmp.eq.s32.totalorder %s14, 0
    %p93 = por %p91, %p92
    %p94 = scmp.le.s32.totalorder 1, %s8
    %p95 = scmp.lt.s32.totalorder %s8, 4
    %p96 = pnand %p94, %p95
    %p97 = pneg %p96
    // Predicated region
    $region9: #{loss_fn.1} parent=5 // pred_check
      _
    $region10: #{loss_fn.1} parent=5 // pred_check_branch
      %99 = sbr.rel (%p96) target = $region12
    $region11: #{loss_fn.1} parent=5 // pred_region
      %s100 = ssub.s32 %s8, 1
    $region12: #{loss_fn.1} parent=5 // pred_fallthru
      _
    %p101 = scmp.lt.s32.totalorder %s8, 3
    // Predicated region
    $region13: #{loss_fn.1} parent=5 // pred_check
      %p102 = pneg %p101
    $region14: #{loss_fn.1} parent=5 // pred_check_branch
      %104 = sbr.rel (%p102) target = $region16
    $region15: #{loss_fn.1} parent=5 // pred_region
      // Predicated region
      $region17: #{loss_fn.1} parent=15 // pred_check
        %p105 = pneg %p28
      $region18: #{loss_fn.1} parent=15 // pred_check_branch
        %107 = sbr.rel (%p105) target = $region20
      $region19: #{loss_fn.1} parent=15 // pred_region
        %s108 = smul.u32 2, %s8
        %p109 = scmp.lt.s32.totalorder %s108, 5
        %s110 = scalar_select %p109, %s108, 5
        %s111 = smul.addr %s110, 8
        %s112 = scalar_lea.vmem %s0, %s111
        %s113 = smul.u32 2, %s8
      $region20: #{loss_fn.1} parent=15 // pred_fallthru
        _
      // Predicated region
      $region21: #{loss_fn.1} parent=15 // pred_check
        %p114 = pneg %p54
      $region22: #{loss_fn.1} parent=15 // pred_check_branch
        %116 = sbr.rel (%p114) target = $region24
      $region23: #{loss_fn.1} parent=15 // pred_region
        %s117 = smul.u32 2, %s8
        %p118 = scmp.lt.s32.totalorder %s117, 5
        %s119 = scalar_select %p118, %s117, 5
        %s120 = smul.addr %s119, 8
        %s121 = scalar_lea.vmem %s1, %s120
        %s122 = smul.u32 2, %s8
      $region24: #{loss_fn.1} parent=15 // pred_fallthru
        _
    $region16: #{loss_fn.1} parent=5 // pred_fallthru
      _
    %p123 = scmp.le.s32.totalorder 1, %s8
    %p124 = scmp.lt.s32.totalorder %s8, 4
    %p125 = pnand %p123, %p124
    %p126 = pneg %p125
    // Predicated region
    $region25: #{loss_fn.1} parent=5 // pred_check
      _
    $region26: #{loss_fn.1} parent=5 // pred_check_branch
      %128 = sbr.rel (%p125) target = $region28
    $region27: #{loss_fn.1} parent=5 // pred_region
      %s129 = ssub.s32 %s8, 1
      %s130 = smul.u32 2, %s13
      %p131 = scmp.lt.s32.totalorder %s130, 5
      %s132 = scalar_select %p131, %s130, 5
      %s133 = smul.addr %s132, 8
      %s134 = scalar_lea.vmem %s0, %s133
      %p135 = pneg %p34
      %p136 = pneg %p31
      %s137 = smul.u32 2, %s13
      %p138 = scmp.lt.s32.totalorder %s137, 5
      %s139 = scalar_select %p138, %s137, 5
      %s140 = smul.addr %s139, 8
      %s141 = scalar_lea.vmem %s1, %s140
      %p142 = pneg %p60
      %p143 = pneg %p57
      %p144 = pneg %p86
      %p145 = pneg %p83
      %p146 = scmp.lt.s32.totalorder %s13, 2
      %s147 = scalar_select %p146, %s13, 2
      %s148 = smul.addr %s147, 8
      %s149 = scalar_lea.vmem %s2, %s148
      %s150 = smul.u32 2, %s13
      %p151 = scmp.lt.s32.totalorder %s150, 5
      %s152 = scalar_select %p151, %s150, 5
      %s153 = smul.addr %s152, 8
      %s154 = scalar_lea.vmem %s0, %s153
      %s155 = smul.u32 2, %s13
      %s156 = smul.u32 2, %s13
      %p157 = scmp.lt.s32.totalorder %s156, 5
      %s158 = scalar_select %p157, %s156, 5
      %s159 = smul.addr %s158, 8
      %s160 = scalar_lea.vmem %s1, %s159
      %s161 = smul.u32 2, %s13
      %p162 = scmp.lt.s32.totalorder %s13, 2
      %s163 = scalar_select %p162, %s13, 2
      %s164 = smul.addr %s163, 8
      %s165 = scalar_lea.vmem %s2, %s164
      %v166 = vld [vmem:[%s154] sm:$0xff]
      %v167 = vld [vmem:[%s154 + $0x8] sm:$0xff]
      %v168 = vld [vmem:[%s160] sm:$0xff]
      %v169 = vld [vmem:[%s160 + $0x8] sm:$0xff]
      %v170 = vlaneseq
      %v171 = vand.u32 %v170, 127
      %v172 = vadd.s32 %v171, 1
      %v173 = vcvt.s32.f32 %v172
      %v174 = vlaneseq
      %v175 = vshrl.u32 %v174, 7
      %v176 = vadd.s32 %v175, 8
      %v177 = vadd.s32 %v175, 16
      %v178 = vadd.s32 %v175, 24
      %v179 = vadd.s32 %v175, 1
      %v180 = vadd.s32 %v176, 1
      %v181 = vadd.s32 %v177, 1
      %v182 = vadd.s32 %v178, 1
      %v183 = vcvt.s32.f32 %v179
      %v184 = vcvt.s32.f32 %v180
      %v185 = vcvt.s32.f32 %v181
      %v186 = vcvt.s32.f32 %v182
      %vm187 = vcmask 261120
      %v188 = vsel %vm187, %v166, -inf
      %189 = vmax.xlane.f32.xlu0 %v188
      %v190 = vpop.xlane.xlu0 %189
      %v191 = vsel %vm187, %v167, -inf
      %192 = vmax.xlane.f32.xlu0 %v191
      %v193 = vpop.xlane.xlu0 %192
      %v194 = vsub.f32 %v166, %v190
      %v195 = vsub.f32 %v167, %v193
      %v196 = vmul.f32 %v194, 1.442695
      %v197 = vpow.pop %v196
      %v198 = vmul.f32 %v195, 1.442695
      %v199 = vpow.pop %v198
      %v201 = vsel %vm187, %v197, 0
      %v204 = vsel %vm187, %v199, 0
      %206 = vmatprep.subr.mxu0 0.0
      %207 = vmatpush1.msra.mxu0 0.0
      %208 = vmatprep.subr.mxu0 0.0
      %209 = vmatpush1.msra.mxu0 0.0
      %210 = vmatprep.subr.mxu0 0.0
      %211 = vmatpush1.msra.mxu0 0.0
      %212 = vmatprep.subr.mxu0 0.0
      %213 = vmatpush1.msra.mxu0 0.0
      %214 = vmatprep.subr.mxu0 0.0
      %215 = vmatpush1.msra.mxu0 0.0
      %216 = vmatprep.subr.mxu0 0.0
      %217 = vmatpush1.msra.mxu0 0.0
      %218 = vmatprep.subr.mxu0 0.0
      %219 = vmatpush1.msra.mxu0 0.0
      %220 = vmatprep.subr.mxu0 0.0
      %221 = vmatpush1.msra.mxu0 0.0
      %222 = vmatprep.subr.mxu0 0.0
      %223 = vmatpush1.msra.mxu0 0.0
      %224 = vmatprep.subr.mxu0 0.0
      %225 = vmatpush1.msra.mxu0 0.0
      %226 = vmatprep.subr.mxu0 0.0
      %227 = vmatpush1.msra.mxu0 0.0
      %228 = vmatprep.subr.mxu0 0.0
      %229 = vmatpush1.msra.mxu0 0.0
      %230 = vmatprep.subr.mxu0 0.0
      %231 = vmatpush1.msra.mxu0 1.0
      %232 = vmatprep.subr.mxu0 0.0
      %233 = vmatpush1.msra.mxu0 1.0
      %234 = vmatprep.subr.mxu0 0.0
      %235 = vmatpush1.msra.mxu0 1.0
      %236 = vmatprep.subr.mxu0 0.0
      %237 = vmatpush1.msra.mxu0 1.0
      %238 = vmatprep.subr.mxu0 0.0
      %239 = vmatpush2.msra.mxu0 0.0
      %240 = vmatprep.subr.mxu0 0.0
      %241 = vmatpush2.msra.mxu0 0.0
      %242 = vmatprep.subr.mxu0 0.0
      %243 = vmatpush2.msra.mxu0 0.0
      %244 = vmatprep.subr.mxu0 0.0
      %245 = vmatpush2.msra.mxu0 0.0
      %246 = vmatprep.subr.mxu0 0.0
      %247 = vmatpush2.msra.mxu0 0.0
      %248 = vmatprep.subr.mxu0 0.0
      %249 = vmatpush2.msra.mxu0 0.0
      %250 = vmatprep.subr.mxu0 0.0
      %251 = vmatpush2.msra.mxu0 0.0
      %252 = vmatprep.subr.mxu0 0.0
      %253 = vmatpush2.msra.mxu0 0.0
      %254 = vmatprep.subr.mxu0 0.0
      %255 = vmatpush2.msra.mxu0 0.0
      %256 = vmatprep.subr.mxu0 0.0
      %257 = vmatpush2.msra.mxu0 0.0
      %258 = vmatprep.subr.mxu0 0.0
      %259 = vmatpush2.msra.mxu0 0.0
      %260 = vmatprep.subr.mxu0 0.0
      %261 = vmatpush2.msra.mxu0 0.0
      %262 = vmatprep.subr.mxu0 0.0
      %263 = vmatpush2.msra.mxu0 0.0
      %264 = vmatprep.subr.mxu0 0.0
      %265 = vmatpush2.msra.mxu0 0.0
      %266 = vmatprep.subr.mxu0 0.0
      %267 = vmatpush2.msra.mxu0 0.0
      %268 = vmatprep.subr.mxu0 0.0
      %269 = vmatpush2.msra.mxu0 0.0
      %270 = vmatprep.mubr.f32.mxu0 0.0
      %271 = vmatmul.mubr.f32.gmra.mxu0 %v201
      %v272 = vpop.f32.mrf.mxu0
      %v273 = vadd.f32 0.0, %v272
      %v274 = vpop.f32.mrf.mxu0
      %275 = vmatprep.mubr.f32.mxu0 0.0
      %276 = vmatmul.mubr.f32.gmra.mxu0 %v204
      %v277 = vpop.f32.mrf.mxu0
      %v278 = vadd.f32 0.0, %v277
      %v279 = vpop.f32.mrf.mxu0
      %280 = vdwg.mxu0
      %v281 = vrcp.pop %v273
      %v282 = vmul.f32 1.0, %v281
      %v283 = vrcp.pop %v278
      %v284 = vmul.f32 1.0, %v283
      %285 = vmatprep.subr.mxu0 0.0
      %286 = vmatpush1.msra.mxu0 0.0
      %287 = vmatprep.subr.mxu0 0.0
      %288 = vmatpush1.msra.mxu0 0.0
      %289 = vmatprep.subr.mxu0 0.0
      %290 = vmatpush1.msra.mxu0 0.0
      %291 = vmatprep.subr.mxu0 0.0
      %292 = vmatpush1.msra.mxu0 0.0
      %293 = vmatprep.subr.mxu0 0.0
      %294 = vmatpush1.msra.mxu0 0.0
      %295 = vmatprep.subr.mxu0 0.0
      %296 = vmatpush1.msra.mxu0 0.0
      %297 = vmatprep.subr.mxu0 0.0
      %298 = vmatpush1.msra.mxu0 0.0
      %299 = vmatprep.subr.mxu0 0.0
      %300 = vmatpush1.msra.mxu0 0.0
      %301 = vmatprep.subr.mxu0 0.0
      %302 = vmatpush1.msra.mxu0 0.0
      %303 = vmatprep.subr.mxu0 0.0
      %304 = vmatpush1.msra.mxu0 0.0
      %305 = vmatprep.subr.mxu0 0.0
      %306 = vmatpush1.msra.mxu0 0.0
      %307 = vmatprep.subr.mxu0 0.0
      %308 = vmatpush1.msra.mxu0 0.0
      %309 = vmatprep.subr.mxu0 0.0
      %310 = vmatpush1.msra.mxu0 %v186
      %311 = vmatprep.subr.mxu0 0.0
      %312 = vmatpush1.msra.mxu0 %v185
      %313 = vmatprep.subr.mxu0 0.0
      %314 = vmatpush1.msra.mxu0 %v184
      %315 = vmatprep.subr.mxu0 0.0
      %316 = vmatpush1.msra.mxu0 %v183
      %317 = vmatprep.subr.mxu0 0.0
      %318 = vmatpush2.msra.mxu0 0.0
      %319 = vmatprep.subr.mxu0 0.0
      %320 = vmatpush2.msra.mxu0 0.0
      %321 = vmatprep.subr.mxu0 0.0
      %322 = vmatpush2.msra.mxu0 0.0
      %323 = vmatprep.subr.mxu0 0.0
      %324 = vmatpush2.msra.mxu0 0.0
      %325 = vmatprep.subr.mxu0 0.0
      %326 = vmatpush2.msra.mxu0 0.0
      %327 = vmatprep.subr.mxu0 0.0
      %328 = vmatpush2.msra.mxu0 0.0
      %329 = vmatprep.subr.mxu0 0.0
      %330 = vmatpush2.msra.mxu0 0.0
      %331 = vmatprep.subr.mxu0 0.0
      %332 = vmatpush2.msra.mxu0 0.0
      %333 = vmatprep.subr.mxu0 0.0
      %334 = vmatpush2.msra.mxu0 0.0
      %335 = vmatprep.subr.mxu0 0.0
      %336 = vmatpush2.msra.mxu0 0.0
      %337 = vmatprep.subr.mxu0 0.0
      %338 = vmatpush2.msra.mxu0 0.0
      %339 = vmatprep.subr.mxu0 0.0
      %340 = vmatpush2.msra.mxu0 0.0
      %341 = vmatprep.subr.mxu0 0.0
      %342 = vmatpush2.msra.mxu0 0.0
      %343 = vmatprep.subr.mxu0 0.0
      %344 = vmatpush2.msra.mxu0 0.0
      %345 = vmatprep.subr.mxu0 0.0
      %346 = vmatpush2.msra.mxu0 0.0
      %347 = vmatprep.subr.mxu0 0.0
      %348 = vmatpush2.msra.mxu0 0.0
      %349 = vmatprep.mubr.f32.mxu0 0.0
      %350 = vmatmul.mubr.f32.gmra.mxu0 %v201
      %v351 = vpop.f32.mrf.mxu0
      %v352 = vadd.f32 0.0, %v351
      %v353 = vpop.f32.mrf.mxu0
      %354 = vmatprep.mubr.f32.mxu0 0.0
      %355 = vmatmul.mubr.f32.gmra.mxu0 %v204
      %v356 = vpop.f32.mrf.mxu0
      %v357 = vadd.f32 0.0, %v356
      %v358 = vpop.f32.mrf.mxu0
      %359 = vdwg.mxu0
      %v360 = vmul.f32 %v352, %v282
      %v361 = vmul.f32 %v357, %v284
      %363 = vset.pattern.permute.xlu0 0
      %364 = vperm.xlu0 %363, %v168
      %v365 = vpop.permute.xlu0 %364
      %368 = vset.pattern.permute.xlu0 0
      %369 = vperm.xlu0 %368, %v169
      %v370 = vpop.permute.xlu0 %369
      %v372 = vsub.f32 %v365, %v173
      %v373 = vsub.f32 %v370, %v173
      %v374 = vmul.f32 %v372, %v372
      %v375 = vmul.f32 %v373, %v373
      %v376 = vmul.f32 %v374, 0.125
      %v377 = vmul.f32 %v375, 0.125
      %v378 = vsub.f32 -1.6120857, %v376
      %v379 = vsub.f32 -1.6120857, %v377
      %v380 = vmul.f32 %v378, 1.442695
      %v381 = vpow.pop %v380
      %v382 = vmul.f32 %v379, 1.442695
      %v383 = vpow.pop %v382
      %v384 = vmul.f32 %v381, %v378
      %v385 = vmul.f32 %v383, %v379
      %v387 = vsel %vm187, %v384, 0
      %v390 = vsel %vm187, %v385, 0
      %392 = vmatprep.subr.mxu0 0.0
      %393 = vmatpush1.msra.mxu0 0.0
      %394 = vmatprep.subr.mxu0 0.0
      %395 = vmatpush1.msra.mxu0 0.0
      %396 = vmatprep.subr.mxu0 0.0
      %397 = vmatpush1.msra.mxu0 0.0
      %398 = vmatprep.subr.mxu0 0.0
      %399 = vmatpush1.msra.mxu0 0.0
      %400 = vmatprep.subr.mxu0 0.0
      %401 = vmatpush1.msra.mxu0 0.0
      %402 = vmatprep.subr.mxu0 0.0
      %403 = vmatpush1.msra.mxu0 0.0
      %404 = vmatprep.subr.mxu0 0.0
      %405 = vmatpush1.msra.mxu0 0.0
      %406 = vmatprep.subr.mxu0 0.0
      %407 = vmatpush1.msra.mxu0 0.0
      %408 = vmatprep.subr.mxu0 0.0
      %409 = vmatpush1.msra.mxu0 0.0
      %410 = vmatprep.subr.mxu0 0.0
      %411 = vmatpush1.msra.mxu0 0.0
      %412 = vmatprep.subr.mxu0 0.0
      %413 = vmatpush1.msra.mxu0 0.0
      %414 = vmatprep.subr.mxu0 0.0
      %415 = vmatpush1.msra.mxu0 0.0
      %416 = vmatprep.subr.mxu0 0.0
      %417 = vmatpush1.msra.mxu0 1.0
      %418 = vmatprep.subr.mxu0 0.0
      %419 = vmatpush1.msra.mxu0 1.0
      %420 = vmatprep.subr.mxu0 0.0
      %421 = vmatpush1.msra.mxu0 1.0
      %422 = vmatprep.subr.mxu0 0.0
      %423 = vmatpush1.msra.mxu0 1.0
      %424 = vmatprep.subr.mxu0 0.0
      %425 = vmatpush2.msra.mxu0 0.0
      %426 = vmatprep.subr.mxu0 0.0
      %427 = vmatpush2.msra.mxu0 0.0
      %428 = vmatprep.subr.mxu0 0.0
      %429 = vmatpush2.msra.mxu0 0.0
      %430 = vmatprep.subr.mxu0 0.0
      %431 = vmatpush2.msra.mxu0 0.0
      %432 = vmatprep.subr.mxu0 0.0
      %433 = vmatpush2.msra.mxu0 0.0
      %434 = vmatprep.subr.mxu0 0.0
      %435 = vmatpush2.msra.mxu0 0.0
      %436 = vmatprep.subr.mxu0 0.0
      %437 = vmatpush2.msra.mxu0 0.0
      %438 = vmatprep.subr.mxu0 0.0
      %439 = vmatpush2.msra.mxu0 0.0
      %440 = vmatprep.subr.mxu0 0.0
      %441 = vmatpush2.msra.mxu0 0.0
      %442 = vmatprep.subr.mxu0 0.0
      %443 = vmatpush2.msra.mxu0 0.0
      %444 = vmatprep.subr.mxu0 0.0
      %445 = vmatpush2.msra.mxu0 0.0
      %446 = vmatprep.subr.mxu0 0.0
      %447 = vmatpush2.msra.mxu0 0.0
      %448 = vmatprep.subr.mxu0 0.0
      %449 = vmatpush2.msra.mxu0 0.0
      %450 = vmatprep.subr.mxu0 0.0
      %451 = vmatpush2.msra.mxu0 0.0
      %452 = vmatprep.subr.mxu0 0.0
      %453 = vmatpush2.msra.mxu0 0.0
      %454 = vmatprep.subr.mxu0 0.0
      %455 = vmatpush2.msra.mxu0 0.0
      %456 = vmatprep.mubr.f32.mxu0 0.0
      %457 = vmatmul.mubr.f32.gmra.mxu0 %v387
      %v458 = vpop.f32.mrf.mxu0
      %v459 = vadd.f32 0.0, %v458
      %v460 = vpop.f32.mrf.mxu0
      %461 = vmatprep.mubr.f32.mxu0 0.0
      %462 = vmatmul.mubr.f32.gmra.mxu0 %v390
      %v463 = vpop.f32.mrf.mxu0
      %v464 = vadd.f32 0.0, %v463
      %v465 = vpop.f32.mrf.mxu0
      %466 = vdwg.mxu0
      %v467 = vmul.f32 %v381, %v197
      %v468 = vmul.f32 %v383, %v199
      %v470 = vsel %vm187, %v467, 0
      %v473 = vsel %vm187, %v468, 0
      %475 = vmatprep.subr.mxu0 0.0
      %476 = vmatpush1.msra.mxu0 0.0
      %477 = vmatprep.subr.mxu0 0.0
      %478 = vmatpush1.msra.mxu0 0.0
      %479 = vmatprep.subr.mxu0 0.0
      %480 = vmatpush1.msra.mxu0 0.0
      %481 = vmatprep.subr.mxu0 0.0
      %482 = vmatpush1.msra.mxu0 0.0
      %483 = vmatprep.subr.mxu0 0.0
      %484 = vmatpush1.msra.mxu0 0.0
      %485 = vmatprep.subr.mxu0 0.0
      %486 = vmatpush1.msra.mxu0 0.0
      %487 = vmatprep.subr.mxu0 0.0
      %488 = vmatpush1.msra.mxu0 0.0
      %489 = vmatprep.subr.mxu0 0.0
      %490 = vmatpush1.msra.mxu0 0.0
      %491 = vmatprep.subr.mxu0 0.0
      %492 = vmatpush1.msra.mxu0 0.0
      %493 = vmatprep.subr.mxu0 0.0
      %494 = vmatpush1.msra.mxu0 0.0
      %495 = vmatprep.subr.mxu0 0.0
      %496 = vmatpush1.msra.mxu0 0.0
      %497 = vmatprep.subr.mxu0 0.0
      %498 = vmatpush1.msra.mxu0 0.0
      %499 = vmatprep.subr.mxu0 0.0
      %500 = vmatpush1.msra.mxu0 1.0
      %501 = vmatprep.subr.mxu0 0.0
      %502 = vmatpush1.msra.mxu0 1.0
      %503 = vmatprep.subr.mxu0 0.0
      %504 = vmatpush1.msra.mxu0 1.0
      %505 = vmatprep.subr.mxu0 0.0
      %506 = vmatpush1.msra.mxu0 1.0
      %507 = vmatprep.subr.mxu0 0.0
      %508 = vmatpush2.msra.mxu0 0.0
      %509 = vmatprep.subr.mxu0 0.0
      %510 = vmatpush2.msra.mxu0 0.0
      %511 = vmatprep.subr.mxu0 0.0
      %512 = vmatpush2.msra.mxu0 0.0
      %513 = vmatprep.subr.mxu0 0.0
      %514 = vmatpush2.msra.mxu0 0.0
      %515 = vmatprep.subr.mxu0 0.0
      %516 = vmatpush2.msra.mxu0 0.0
      %517 = vmatprep.subr.mxu0 0.0
      %518 = vmatpush2.msra.mxu0 0.0
      %519 = vmatprep.subr.mxu0 0.0
      %520 = vmatpush2.msra.mxu0 0.0
      %521 = vmatprep.subr.mxu0 0.0
      %522 = vmatpush2.msra.mxu0 0.0
      %523 = vmatprep.subr.mxu0 0.0
      %524 = vmatpush2.msra.mxu0 0.0
      %525 = vmatprep.subr.mxu0 0.0
      %526 = vmatpush2.msra.mxu0 0.0
      %527 = vmatprep.subr.mxu0 0.0
      %528 = vmatpush2.msra.mxu0 0.0
      %529 = vmatprep.subr.mxu0 0.0
      %530 = vmatpush2.msra.mxu0 0.0
      %531 = vmatprep.subr.mxu0 0.0
      %532 = vmatpush2.msra.mxu0 0.0
      %533 = vmatprep.subr.mxu0 0.0
      %534 = vmatpush2.msra.mxu0 0.0
      %535 = vmatprep.subr.mxu0 0.0
      %536 = vmatpush2.msra.mxu0 0.0
      %537 = vmatprep.subr.mxu0 0.0
      %538 = vmatpush2.msra.mxu0 0.0
      %539 = vmatprep.mubr.f32.mxu0 0.0
      %540 = vmatmul.mubr.f32.gmra.mxu0 %v470
      %v541 = vpop.f32.mrf.mxu0
      %v542 = vadd.f32 0.0, %v541
      %v543 = vpop.f32.mrf.mxu0
      %544 = vmatprep.mubr.f32.mxu0 0.0
      %545 = vmatmul.mubr.f32.gmra.mxu0 %v473
      %v546 = vpop.f32.mrf.mxu0
      %v547 = vadd.f32 0.0, %v546
      %v548 = vpop.f32.mrf.mxu0
      %549 = vdwg.mxu0
      %v550 = vmul.f32 %v542, %v282
      %v551 = vmul.f32 %v547, %v284
      %v552 = vsub.f32 %v459, %v550
      %v553 = vsub.f32 %v464, %v551
      %v554 = vmul.f32 %v552, 0.00078125
      %v555 = vmul.f32 %v553, 0.00078125
      %v556 = vadd.f32 %v554, 0.0
      %v557 = vadd.f32 %v555, 0.0
      %v558 = vsub.f32 %v360, %v168
      %v559 = vsub.f32 %v361, %v169
      %v560 = vand.u32 2147483647, %v558
      %v561 = vand.u32 2147483647, %v559
      %v562 = vmul.f32 %v560, 0.0125
      %v563 = vmul.f32 %v561, 0.0125
      %v564 = vadd.f32 %v556, %v562
      %v565 = vadd.f32 %v557, %v563
      %567 = vset.pattern.permute.xlu0 0
      %568 = vperm.xlu0 %567, %v360
      %v569 = vpop.permute.xlu0 %568
      %572 = vset.pattern.permute.xlu0 0
      %573 = vperm.xlu0 %572, %v361
      %v574 = vpop.permute.xlu0 %573
      %v576 = vsub.f32 %v569, %v173
      %v577 = vsub.f32 %v574, %v173
      %v578 = vmul.f32 %v197, %v576
      %v579 = vmul.f32 %v199, %v577
      %v580 = vmul.f32 %v578, %v576
      %v581 = vmul.f32 %v579, %v577
      %v583 = vsel %vm187, %v580, 0
      %v586 = vsel %vm187, %v581, 0
      %588 = vmatprep.subr.mxu0 0.0
      %589 = vmatpush1.msra.mxu0 0.0
      %590 = vmatprep.subr.mxu0 0.0
      %591 = vmatpush1.msra.mxu0 0.0
      %592 = vmatprep.subr.mxu0 0.0
      %593 = vmatpush1.msra.mxu0 0.0
      %594 = vmatprep.subr.mxu0 0.0
      %595 = vmatpush1.msra.mxu0 0.0
      %596 = vmatprep.subr.mxu0 0.0
      %597 = vmatpush1.msra.mxu0 0.0
      %598 = vmatprep.subr.mxu0 0.0
      %599 = vmatpush1.msra.mxu0 0.0
      %600 = vmatprep.subr.mxu0 0.0
      %601 = vmatpush1.msra.mxu0 0.0
      %602 = vmatprep.subr.mxu0 0.0
      %603 = vmatpush1.msra.mxu0 0.0
      %604 = vmatprep.subr.mxu0 0.0
      %605 = vmatpush1.msra.mxu0 0.0
      %606 = vmatprep.subr.mxu0 0.0
      %607 = vmatpush1.msra.mxu0 0.0
      %608 = vmatprep.subr.mxu0 0.0
      %609 = vmatpush1.msra.mxu0 0.0
      %610 = vmatprep.subr.mxu0 0.0
      %611 = vmatpush1.msra.mxu0 0.0
      %612 = vmatprep.subr.mxu0 0.0
      %613 = vmatpush1.msra.mxu0 1.0
      %614 = vmatprep.subr.mxu0 0.0
      %615 = vmatpush1.msra.mxu0 1.0
      %616 = vmatprep.subr.mxu0 0.0
      %617 = vmatpush1.msra.mxu0 1.0
      %618 = vmatprep.subr.mxu0 0.0
      %619 = vmatpush1.msra.mxu0 1.0
      %620 = vmatprep.subr.mxu0 0.0
      %621 = vmatpush2.msra.mxu0 0.0
      %622 = vmatprep.subr.mxu0 0.0
      %623 = vmatpush2.msra.mxu0 0.0
      %624 = vmatprep.subr.mxu0 0.0
      %625 = vmatpush2.msra.mxu0 0.0
      %626 = vmatprep.subr.mxu0 0.0
      %627 = vmatpush2.msra.mxu0 0.0
      %628 = vmatprep.subr.mxu0 0.0
      %629 = vmatpush2.msra.mxu0 0.0
      %630 = vmatprep.subr.mxu0 0.0
      %631 = vmatpush2.msra.mxu0 0.0
      %632 = vmatprep.subr.mxu0 0.0
      %633 = vmatpush2.msra.mxu0 0.0
      %634 = vmatprep.subr.mxu0 0.0
      %635 = vmatpush2.msra.mxu0 0.0
      %636 = vmatprep.subr.mxu0 0.0
      %637 = vmatpush2.msra.mxu0 0.0
      %638 = vmatprep.subr.mxu0 0.0
      %639 = vmatpush2.msra.mxu0 0.0
      %640 = vmatprep.subr.mxu0 0.0
      %641 = vmatpush2.msra.mxu0 0.0
      %642 = vmatprep.subr.mxu0 0.0
      %643 = vmatpush2.msra.mxu0 0.0
      %644 = vmatprep.subr.mxu0 0.0
      %645 = vmatpush2.msra.mxu0 0.0
      %646 = vmatprep.subr.mxu0 0.0
      %647 = vmatpush2.msra.mxu0 0.0
      %648 = vmatprep.subr.mxu0 0.0
      %649 = vmatpush2.msra.mxu0 0.0
      %650 = vmatprep.subr.mxu0 0.0
      %651 = vmatpush2.msra.mxu0 0.0
      %652 = vmatprep.mubr.f32.mxu0 0.0
      %653 = vmatmul.mubr.f32.gmra.mxu0 %v583
      %v654 = vpop.f32.mrf.mxu0
      %v655 = vadd.f32 0.0, %v654
      %v656 = vpop.f32.mrf.mxu0
      %657 = vmatprep.mubr.f32.mxu0 0.0
      %658 = vmatmul.mubr.f32.gmra.mxu0 %v586
      %v659 = vpop.f32.mrf.mxu0
      %v660 = vadd.f32 0.0, %v659
      %v661 = vpop.f32.mrf.mxu0
      %662 = vdwg.mxu0
      %v663 = vmul.f32 %v655, %v282
      %v664 = vmul.f32 %v660, %v284
      %v665 = vmul.f32 %v663, 0.0025
      %v666 = vmul.f32 %v664, 0.0025
      %v667 = vadd.f32 %v564, %v665
      %v668 = vadd.f32 %v565, %v666
      %s669 = smul.u32 %s13, 16
      %v670 = vstv %s669
      %v671 = vadd.s32 %v175, %v670
      %v672 = vadd.s32 %v176, %v670
      %vm673 = vcmp.lt.s32.totalorder %v671, 40
      %vm674 = vcmp.lt.s32.totalorder %v672, 40
      %v675 = vsel %vm673, %v667, 0.0
      %v676 = vsel %vm674, %v668, 0.0
      %vm677 = vcmask 7168
      %v678 = vsel %vm677, %v675, 0.0
      %v679 = vsel %vm677, %v676, 0.0
      %v680 = vadd.f32 %v678, %v679
      %681 = vadd.xlane.f32.xlu0 %v680
      %v682 = vpop.xlane.xlu0 %681
      %v683 = vrot.slane %v682, 4
      %v684 = vadd.f32 %v682, %v683
      %v685 = vrot.slane %v684, 2
      %v686 = vadd.f32 %v684, %v685
      %v687 = vrot.slane %v686, 1
      %v688 = vadd.f32 %v686, %v687
      %s689 = vtos %v688
      %v690 = vstv %s689
      %691 = vst [vmem:[%s165] sm:$0xff] %v690
      %p692 = scmp.lt.s32.totalorder %s13, 2
      %s693 = scalar_select %p692, %s13, 2
      %s694 = smul.addr %s693, 8
      %s695 = scalar_lea.vmem %s2, %s694
      // Predicated region
      $region29: #{loss_fn.1} parent=27 // pred_check
        %p696 = pneg %p83
      $region30: #{loss_fn.1} parent=27 // pred_check_branch
        %698 = sbr.rel (%p696) target = $region32
      $region31: #{loss_fn.1} parent=27 // pred_region
        _
      $region32: #{loss_fn.1} parent=27 // pred_fallthru
        _
    $region28: #{loss_fn.1} parent=5 // pred_fallthru
      _
    %p699 = scmp.le.s32.totalorder 2, %s8
    // Predicated region
    $region33: #{loss_fn.1} parent=5 // pred_check
      %p700 = pneg %p699
    $region34: #{loss_fn.1} parent=5 // pred_check_branch
      %702 = sbr.rel (%p700) target = $region36
    $region35: #{loss_fn.1} parent=5 // pred_region
      %s703 = ssub.s32 %s8, 2
      // Predicated region
      $region37: #{loss_fn.1} parent=35 // pred_check
        %p704 = pneg %p89
      $region38: #{loss_fn.1} parent=35 // pred_check_branch
        %706 = sbr.rel (%p704) target = $region40
      $region39: #{loss_fn.1} parent=35 // pred_region
        %p707 = scmp.lt.s32.totalorder %s14, 2
        %s708 = scalar_select %p707, %s14, 2
        %s709 = smul.addr %s708, 8
        %s710 = scalar_lea.vmem %s2, %s709
      $region40: #{loss_fn.1} parent=35 // pred_fallthru
        _
    $region36: #{loss_fn.1} parent=5 // pred_fallthru
      _
  $region6: #{loss_fn.1} parent=0 // loop_footer
    %s12 = sadd.s32 1, %s8
  $region7: #{loss_fn.1} parent=0 // loop_footer_branch
    %7 = sbr.rel target = $region3
  $region8: #{loss_fn.1} parent=0 // loop_exit
    _

</llo_original>
